<compile_context>
chip_gen: v5e
topology: v5e:2x2
jax: 0.10.0
libtpu: 0.0.40
codegen_flags: <defaults>
</compile_context>

<pallas_src>
import math
import jax
import jax.numpy as jnp
from jax.experimental import pallas as pl
from jax.experimental.pallas import tpu as pltpu

# ---- small, consistent model config (PyTorch args: dim, n_heads, n_kv_heads, multiple_of) ----
B, S, D = 2, 8, 64
N_HEADS, N_KV_HEADS = 4, 2
HEAD_DIM = D // N_HEADS            # 16
HD2 = HEAD_DIM // 2                # 8
KVD = N_KV_HEADS * HEAD_DIM        # 32
N_REP = N_HEADS // N_KV_HEADS      # 2
MULTIPLE_OF = 32
HIDDEN = MULTIPLE_OF * ((int(2 * (4 * D) / 3) + MULTIPLE_OF - 1) // MULTIPLE_OF)  # 192
EPS = 1e-5
NEG_INF = -1e30
R = B * S                          # 16 rows total (batch folded into rows)
QKV_W = D + 2 * KVD                # 128 fused q|k|v output lanes
# TODO(synk): attn/resid/ffn dropout have p=0.0 (eval semantics) -> intentionally a no-op.


def _rmsnorm(v):
    # RMSNorm weight is folded into the following projection weight (see prep).
    return v * jax.lax.rsqrt(jnp.mean(v * v, axis=-1, keepdims=True) + EPS)


def transformer_block_kernel(x_ref, rope_ref, wqkv_ref, wo_ref, w13_ref, w2_ref, o_ref):
    x = x_ref[...]                                              # (S, D) f32, one batch element

    # ---- attention_norm (weight folded into wqkv) + fused q|k|v projection ----
    xn = _rmsnorm(x).astype(jnp.bfloat16)
    qkv = jnp.dot(xn, wqkv_ref[...], preferred_element_type=jnp.float32)   # (S, 128) f32

    # ---- RoPE on the whole fused tensor (columns per head: [real(8) | imag(8)]) ----
    #   out = x*cos + roll(x,-8)*(-sin on real cols) + roll(x,+8)*(+sin on imag cols)
    # V columns have cos=1 / sin=0 so they pass through unchanged.  The rolls are
    # static lane shifts (lowered as slice+concat), all math stays in f32.
    qkv_rot = (qkv * rope_ref[0]
               + jnp.roll(qkv, -HD2, axis=1) * rope_ref[1]
               + jnp.roll(qkv, HD2, axis=1) * rope_ref[2])

    # ---- GQA-grouped attention operands (rep query heads folded onto rows) ----
    q_blk = [qkv_rot[:, h * HEAD_DIM:(h + 1) * HEAD_DIM] for h in range(N_HEADS)]
    Qg = jnp.stack([jnp.concatenate(q_blk[g * N_REP:(g + 1) * N_REP], axis=0)
                    for g in range(N_KV_HEADS)]).astype(jnp.bfloat16)      # (G, N_REP*S, hd)
    Kg = jnp.stack([qkv_rot[:, D + g * HEAD_DIM:D + (g + 1) * HEAD_DIM]
                    for g in range(N_KV_HEADS)]).astype(jnp.bfloat16)      # (G, S, hd)
    Vg = jnp.stack([qkv_rot[:, D + KVD + g * HEAD_DIM:D + KVD + (g + 1) * HEAD_DIM]
                    for g in range(N_KV_HEADS)]).astype(jnp.bfloat16)      # (G, S, hd)

    # ---- causal softmax attention (merged real|imag contraction; f32 softmax) ----
    scores = jnp.einsum('gqd,gkd->gqk', Qg, Kg,
                        preferred_element_type=jnp.float32)                # (G, N_REP*S, S)
    q_pos = jax.lax.broadcasted_iota(jnp.int32, (N_KV_HEADS, N_REP * S, S), 1) % S
    k_pos = jax.lax.broadcasted_iota(jnp.int32, (N_KV_HEADS, N_REP * S, S), 2)
    scores = jnp.where(k_pos <= q_pos, scores, NEG_INF)
    m = jnp.max(scores, axis=-1, keepdims=True)
    p = jnp.exp(scores - m)
    p = p * pl.reciprocal(jnp.sum(p, axis=-1, keepdims=True), approx=True)
    pv = jnp.einsum('gqk,gkd->gqd', p.astype(jnp.bfloat16), Vg,
                    preferred_element_type=jnp.float32)                    # (G, N_REP*S, hd)

    # ---- output projection: ONE (S,D)@(D,D) matmul; head reduction in the MXU acc ----
    attn = jnp.concatenate(
        [pv[g, r * S:(r + 1) * S, :] for g in range(N_KV_HEADS) for r in range(N_REP)],
        axis=1)                                                            # (S, D) head-major
    h_res = x + jnp.dot(attn.astype(jnp.bfloat16), wo_ref[...],
                        preferred_element_type=jnp.float32)                # first residual

    # ---- ffn_norm (weight folded into w13) + fused SwiGLU FFN ----
    hn = _rmsnorm(h_res).astype(jnp.bfloat16)
    ff13 = jnp.dot(hn, w13_ref[...], preferred_element_type=jnp.float32)   # (S, 2*HIDDEN)
    a = ff13[:, :HIDDEN]
    g3 = ff13[:, HIDDEN:]
    gated = a * pl.reciprocal(1.0 + jnp.exp(-a), approx=True) * g3         # silu(a) * b, f32
    ff = jnp.dot(gated.astype(jnp.bfloat16), w2_ref[...],
                 preferred_element_type=jnp.float32)                       # (S, D)

    o_ref[...] = h_res + ff                                                # second residual


def prepare_block_params(freqs_cos, freqs_sin, wq, wk, wv, wo, anorm, fnorm, w1, w3, w2):
    """One-time host-side prep (hoisted out of the per-call path per perf review)."""
    def head_perm(n_heads):
        # new column h*HEAD_DIM + p*HD2 + j  <-  original column h*HEAD_DIM + 2j + p
        idx = [h * HEAD_DIM + 2 * j + p
               for h in range(n_heads) for p in range(2) for j in range(HD2)]
        return jnp.array(idx, jnp.int32)

    # 1/sqrt(head_dim) folded into wq; attention_norm weight folded into q|k|v rows.
    wq_p = (wq / math.sqrt(HEAD_DIM))[:, head_perm(N_HEADS)]
    wk_p = wk[:, head_perm(N_KV_HEADS)]
    wqkv = (anorm[:, None] * jnp.concatenate([wq_p, wk_p, wv], axis=1)).astype(jnp.bfloat16)
    wo_b = wo.astype(jnp.bfloat16)
    # ffn_norm weight folded into the fused w1|w3 rows.
    w13 = (fnorm[:, None] * jnp.concatenate([w1, w3], axis=1)).astype(jnp.bfloat16)
    w2_b = w2.astype(jnp.bfloat16)

    # RoPE tables over the fused 128 columns: cos, (-sin on real cols), (+sin on imag cols);
    # identity (cos=1, sin=0) over the V columns.
    cos_blk = jnp.concatenate([freqs_cos, freqs_cos], axis=1)                    # (S, 16)
    nsin_blk = jnp.concatenate([-freqs_sin, jnp.zeros_like(freqs_sin)], axis=1)  # (S, 16)
    psin_blk = jnp.concatenate([jnp.zeros_like(freqs_sin), freqs_sin], axis=1)   # (S, 16)

    def full_table(blk, v_fill):
        return jnp.concatenate(
            [jnp.tile(blk, (1, N_HEADS)), jnp.tile(blk, (1, N_KV_HEADS)),
             jnp.full((S, KVD), v_fill, jnp.float32)], axis=1)                   # (S, 128)

    rope = jnp.stack([full_table(cos_blk, 1.0),
                      full_table(nsin_blk, 0.0),
                      full_table(psin_blk, 0.0)]).astype(jnp.float32)            # (3, S, 128)
    return rope, wqkv, wo_b, w13, w2_b


@jax.jit
def transformer_block(x, rope, wqkv, wo_b, w13, w2_b):
    """x: (B, S, D) f32; remaining args come from prepare_block_params (computed once)."""
    x_flat = x.reshape(R, D).astype(jnp.float32)
    out_flat = pl.pallas_call(
        transformer_block_kernel,
        grid=(B,),
        in_specs=[
            pl.BlockSpec((S, D), lambda b: (b, 0)),               # x: one batch per grid step
            pl.BlockSpec((3, S, QKV_W), lambda b: (0, 0, 0)),     # RoPE tables (shared)
            pl.BlockSpec((D, QKV_W), lambda b: (0, 0)),           # fused wq|wk|wv
            pl.BlockSpec((D, D), lambda b: (0, 0)),               # wo
            pl.BlockSpec((D, 2 * HIDDEN), lambda b: (0, 0)),      # fused w1|w3
            pl.BlockSpec((HIDDEN, D), lambda b: (0, 0)),          # w2
        ],
        out_specs=pl.BlockSpec((S, D), lambda b: (b, 0)),
        out_shape=jax.ShapeDtypeStruct((R, D), jnp.float32),
        compiler_params=pltpu.CompilerParams(dimension_semantics=("parallel",)),
    )(x_flat, rope, wqkv, wo_b, w13, w2_b)
    return out_flat.reshape(B, S, D)


def reference(x, cos_half, sin_half, wq, wk, wv, wo, w1, w3, w2):
    """Pure-JAX mirror of the PyTorch forward (RMSNorm weights are ones)."""
    P = jax.lax.Precision.HIGHEST

    def rms(v):
        return v * jax.lax.rsqrt(jnp.mean(v * v, -1, keepdims=True) + EPS)

    xn = rms(x)
    q = jnp.dot(xn, wq, precision=P).reshape(B, S, N_HEADS, HEAD_DIM)
    k = jnp.dot(xn, wk, precision=P).reshape(B, S, N_KV_HEADS, HEAD_DIM)
    v = jnp.dot(xn, wv, precision=P).reshape(B, S, N_KV_HEADS, HEAD_DIM)

    def rope(t):
        tr = t.reshape(t.shape[:-1] + (HEAD_DIM // 2, 2))
        r, i = tr[..., 0], tr[..., 1]
        c = cos_half[None, :, None, :]
        s = sin_half[None, :, None, :]
        return jnp.stack([r * c - i * s, r * s + i * c], -1).reshape(t.shape)

    q, k = rope(q), rope(k)
    k = jnp.repeat(k, N_REP, axis=2)
    v = jnp.repeat(v, N_REP, axis=2)
    q, k, v = (t.transpose(0, 2, 1, 3) for t in (q, k, v))
    scores = jnp.einsum("bhqd,bhkd->bhqk", q, k, precision=P) / math.sqrt(HEAD_DIM)
    mask = jnp.tril(jnp.ones((S, S), bool))
    scores = jnp.where(mask, scores, -jnp.inf)
    p = jax.nn.softmax(scores, axis=-1)
    out = jnp.einsum("bhqk,bhkd->bhqd", p, v, precision=P)
    out = out.transpose(0, 2, 1, 3).reshape(B, S, D)
    h = x + jnp.dot(out, wo, precision=P)
    hn = rms(h)
    ff = jnp.dot(jax.nn.silu(jnp.dot(hn, w1, precision=P)) * jnp.dot(hn, w3, precision=P),
                 w2, precision=P)
    return h + ff


if __name__ == "__main__":
    key = jax.random.PRNGKey(0)
    ks = jax.random.split(key, 8)

    x = jax.random.normal(ks[0], (B, S, D), jnp.float32)
    wq = 0.05 * jax.random.normal(ks[1], (D, D), jnp.float32)
    wk = 0.05 * jax.random.normal(ks[2], (D, KVD), jnp.float32)
    wv = 0.05 * jax.random.normal(ks[3], (D, KVD), jnp.float32)
    wo = 0.05 * jax.random.normal(ks[4], (D, D), jnp.float32)
    w1 = 0.05 * jax.random.normal(ks[5], (D, HIDDEN), jnp.float32)
    w3 = 0.05 * jax.random.normal(ks[6], (D, HIDDEN), jnp.float32)
    w2 = 0.05 * jax.random.normal(ks[7], (HIDDEN, D), jnp.float32)
    anorm = jnp.ones((D,), jnp.float32)     # RMSNorm weights init to ones
    fnorm = jnp.ones((D,), jnp.float32)

    # rotary tables (as in llama precompute_freqs_cis): (S, HEAD_DIM // 2)
    inv_freq = 1.0 / (10000.0 ** (jnp.arange(0, HEAD_DIM, 2, dtype=jnp.float32) / HEAD_DIM))
    t = jnp.arange(S, dtype=jnp.float32)
    freqs = jnp.outer(t, inv_freq)
    cos_half, sin_half = jnp.cos(freqs), jnp.sin(freqs)

    # One-time weight prep (hoisted out of the per-call path).
    params = prepare_block_params(cos_half, sin_half, wq, wk, wv, wo,
                                  anorm, fnorm, w1, w3, w2)
    params = jax.block_until_ready(params)

    out = transformer_block(x, *params)
    out = jax.block_until_ready(out)

    ref = jax.block_until_ready(reference(x, cos_half, sin_half, wq, wk, wv, wo, w1, w3, w2))
    assert out.shape == (B, S, D)
    assert bool(jnp.all(jnp.isfinite(out)))
    err = float(jnp.max(jnp.abs(out - ref)))
    # bf16 matmul operands + approx-EUP reciprocals -> slightly looser tolerance than pure f32.
    assert bool(jnp.allclose(out, ref, rtol=2e-2, atol=2e-2)), f"max abs err {err}"

    print("KERNEL_OK")
</pallas_src>

<mosaic_0001>
module attributes {stable_mosaic.version = 11 : i64} {
  func.func @transformer_block_kernel(%arg0: i32, %arg1: memref<8x64xf32, #tpu.memory_space<vmem>>, %arg2: memref<3x8x128xf32, #tpu.memory_space<vmem>>, %arg3: memref<64x128xbf16, #tpu.memory_space<vmem>>, %arg4: memref<64x64xbf16, #tpu.memory_space<vmem>>, %arg5: memref<64x384xbf16, #tpu.memory_space<vmem>>, %arg6: memref<192x64xbf16, #tpu.memory_space<vmem>>, %arg7: memref<8x64xf32, #tpu.memory_space<vmem>>) attributes {dimension_semantics = [#tpu.dimension_semantics<parallel>], iteration_bounds = array<i64: 2>, scalar_prefetch = 0 : i64, scratch_operands = 0 : i64, tpu.core_type = #tpu.core_type<tc>, window_params = [{transform_indices = @transform_0, window_bounds = array<i64: 8, 64>}, {pipeline_mode = #tpu.pipeline_mode<synchronous>, transform_indices = @transform_1, window_bounds = array<i64: 3, 8, 128>}, {pipeline_mode = #tpu.pipeline_mode<synchronous>, transform_indices = @transform_2, window_bounds = array<i64: 64, 128>}, {pipeline_mode = #tpu.pipeline_mode<synchronous>, transform_indices = @transform_3, window_bounds = array<i64: 64, 64>}, {pipeline_mode = #tpu.pipeline_mode<synchronous>, transform_indices = @transform_4, window_bounds = array<i64: 64, 384>}, {pipeline_mode = #tpu.pipeline_mode<synchronous>, transform_indices = @transform_5, window_bounds = array<i64: 192, 64>}, {transform_indices = @transform_6, window_bounds = array<i64: 8, 64>}]} {
    %c0 = arith.constant 0 : index
    %c0_0 = arith.constant 0 : index
    %0 = vector.load %arg1[%c0, %c0_0] : memref<8x64xf32, #tpu.memory_space<vmem>>, vector<8x64xf32>
    %1 = arith.mulf %0, %0 : vector<8x64xf32>
    %cst = arith.constant dense<0.000000e+00> : vector<8xf32>
    %2 = vector.multi_reduction <add>, %1, %cst [1] : vector<8x64xf32> to vector<8xf32>
    %3 = vector.shape_cast %2 : vector<8xf32> to vector<8x1xf32>
    %cst_1 = arith.constant 6.400000e+01 : f32
    %4 = vector.broadcast %cst_1 : f32 to vector<8x1xf32>
    %5 = arith.divf %3, %4 : vector<8x1xf32>
    %cst_2 = arith.constant 9.99999974E-6 : f32
    %6 = vector.broadcast %cst_2 : f32 to vector<8x1xf32>
    %7 = arith.addf %5, %6 : vector<8x1xf32>
    %8 = math.rsqrt %7 : vector<8x1xf32>
    %9 = vector.broadcast %8 : vector<8x1xf32> to vector<8x64xf32>
    %10 = arith.mulf %0, %9 : vector<8x64xf32>
    %11 = arith.truncf %10 : vector<8x64xf32> to vector<8x64xbf16>
    %c0_3 = arith.constant 0 : index
    %c0_4 = arith.constant 0 : index
    %12 = vector.load %arg3[%c0_3, %c0_4] : memref<64x128xbf16, #tpu.memory_space<vmem>>, vector<64x128xbf16>
    %cst_5 = arith.constant dense<0.000000e+00> : vector<8x128xf32>
    %13 = tpu.matmul %11, %12, %cst_5 {dimension_numbers = #tpu.dot_dimension_numbers<[1], [0], [0], [1], [0, 0, 1, 1], [], []>} : vector<8x64xbf16>, vector<64x128xbf16>, vector<8x128xf32> -> vector<8x128xf32>
    %c0_6 = arith.constant 0 : index
    %c0_7 = arith.constant 0 : index
    %c0_8 = arith.constant 0 : index
    %14 = vector.load %arg2[%c0_6, %c0_7, %c0_8] : memref<3x8x128xf32, #tpu.memory_space<vmem>>, vector<1x8x128xf32>
    %15 = vector.shape_cast %14 : vector<1x8x128xf32> to vector<8x128xf32>
    %16 = arith.mulf %13, %15 : vector<8x128xf32>
    %17 = vector.extract_strided_slice %13 {offsets = [0, 8], sizes = [8, 120], strides = [1, 1]} : vector<8x128xf32> to vector<8x120xf32>
    %18 = vector.extract_strided_slice %13 {offsets = [0, 0], sizes = [8, 8], strides = [1, 1]} : vector<8x128xf32> to vector<8x8xf32>
    %19 = tpu.concatenate %17, %18 in 1 : vector<8x120xf32>, vector<8x8xf32> -> vector<8x128xf32>
    %c1 = arith.constant 1 : index
    %c0_9 = arith.constant 0 : index
    %c0_10 = arith.constant 0 : index
    %20 = vector.load %arg2[%c1, %c0_9, %c0_10] : memref<3x8x128xf32, #tpu.memory_space<vmem>>, vector<1x8x128xf32>
    %21 = vector.shape_cast %20 : vector<1x8x128xf32> to vector<8x128xf32>
    %22 = arith.mulf %19, %21 : vector<8x128xf32>
    %23 = arith.addf %16, %22 : vector<8x128xf32>
    %24 = vector.extract_strided_slice %13 {offsets = [0, 120], sizes = [8, 8], strides = [1, 1]} : vector<8x128xf32> to vector<8x8xf32>
    %25 = vector.extract_strided_slice %13 {offsets = [0, 0], sizes = [8, 120], strides = [1, 1]} : vector<8x128xf32> to vector<8x120xf32>
    %26 = tpu.concatenate %24, %25 in 1 : vector<8x8xf32>, vector<8x120xf32> -> vector<8x128xf32>
    %c2 = arith.constant 2 : index
    %c0_11 = arith.constant 0 : index
    %c0_12 = arith.constant 0 : index
    %27 = vector.load %arg2[%c2, %c0_11, %c0_12] : memref<3x8x128xf32, #tpu.memory_space<vmem>>, vector<1x8x128xf32>
    %28 = vector.shape_cast %27 : vector<1x8x128xf32> to vector<8x128xf32>
    %29 = arith.mulf %26, %28 : vector<8x128xf32>
    %30 = arith.addf %23, %29 : vector<8x128xf32>
    %31 = vector.extract_strided_slice %30 {offsets = [0, 0], sizes = [8, 16], strides = [1, 1]} : vector<8x128xf32> to vector<8x16xf32>
    %32 = vector.extract_strided_slice %30 {offsets = [0, 16], sizes = [8, 16], strides = [1, 1]} : vector<8x128xf32> to vector<8x16xf32>
    %33 = vector.extract_strided_slice %30 {offsets = [0, 32], sizes = [8, 16], strides = [1, 1]} : vector<8x128xf32> to vector<8x16xf32>
    %34 = vector.extract_strided_slice %30 {offsets = [0, 48], sizes = [8, 16], strides = [1, 1]} : vector<8x128xf32> to vector<8x16xf32>
    %35 = tpu.concatenate %31, %32 in 0 : vector<8x16xf32>, vector<8x16xf32> -> vector<16x16xf32>
    %36 = tpu.concatenate %33, %34 in 0 : vector<8x16xf32>, vector<8x16xf32> -> vector<16x16xf32>
    %37 = vector.shape_cast %35 : vector<16x16xf32> to vector<1x16x16xf32>
    %38 = vector.shape_cast %36 : vector<16x16xf32> to vector<1x16x16xf32>
    %39 = tpu.concatenate %37, %38 in 0 : vector<1x16x16xf32>, vector<1x16x16xf32> -> vector<2x16x16xf32>
    %40 = arith.truncf %39 : vector<2x16x16xf32> to vector<2x16x16xbf16>
    %41 = vector.extract_strided_slice %30 {offsets = [0, 64], sizes = [8, 16], strides = [1, 1]} : vector<8x128xf32> to vector<8x16xf32>
    %42 = vector.extract_strided_slice %30 {offsets = [0, 80], sizes = [8, 16], strides = [1, 1]} : vector<8x128xf32> to vector<8x16xf32>
    %43 = vector.shape_cast %41 : vector<8x16xf32> to vector<1x8x16xf32>
    %44 = vector.shape_cast %42 : vector<8x16xf32> to vector<1x8x16xf32>
    %45 = tpu.concatenate %43, %44 in 0 : vector<1x8x16xf32>, vector<1x8x16xf32> -> vector<2x8x16xf32>
    %46 = arith.truncf %45 : vector<2x8x16xf32> to vector<2x8x16xbf16>
    %47 = vector.extract_strided_slice %30 {offsets = [0, 96], sizes = [8, 16], strides = [1, 1]} : vector<8x128xf32> to vector<8x16xf32>
    %48 = vector.extract_strided_slice %30 {offsets = [0, 112], sizes = [8, 16], strides = [1, 1]} : vector<8x128xf32> to vector<8x16xf32>
    %49 = vector.shape_cast %47 : vector<8x16xf32> to vector<1x8x16xf32>
    %50 = vector.shape_cast %48 : vector<8x16xf32> to vector<1x8x16xf32>
    %51 = tpu.concatenate %49, %50 in 0 : vector<1x8x16xf32>, vector<1x8x16xf32> -> vector<2x8x16xf32>
    %52 = arith.truncf %51 : vector<2x8x16xf32> to vector<2x8x16xbf16>
    "tpu.trace_start"() <{level = 10 : i32, message = "gqd,gkd->gqk"}> : () -> ()
    %cst_13 = arith.constant dense<0.000000e+00> : vector<2x16x8xf32>
    %53 = tpu.matmul %40, %46, %cst_13 {dimension_numbers = #tpu.dot_dimension_numbers<[2], [2], [1], [1], [0, 0, 0, 1, 1, 1], [0], [0]>} : vector<2x16x16xbf16>, vector<2x8x16xbf16>, vector<2x16x8xf32> -> vector<2x16x8xf32>
    "tpu.trace_stop"() : () -> ()
    %54 = tpu.iota {dimensions = array<i32: 1>} : vector<2x16x8xi32>
    %c8_i32 = arith.constant 8 : i32
    %c0_i32 = arith.constant 0 : i32
    %55 = arith.cmpi eq, %c8_i32, %c0_i32 : i32
    %c1_i32 = arith.constant 1 : i32
    %56 = arith.select %55, %c1_i32, %c8_i32 : i32
    %57 = vector.broadcast %56 : i32 to vector<2x16x8xi32>
    %58 = arith.remsi %54, %57 : vector<2x16x8xi32>
    %c0_i32_14 = arith.constant 0 : i32
    %59 = vector.broadcast %c0_i32_14 : i32 to vector<2x16x8xi32>
    %60 = arith.cmpi ne, %58, %59 : vector<2x16x8xi32>
    %c0_i32_15 = arith.constant 0 : i32
    %61 = vector.broadcast %c0_i32_15 : i32 to vector<2x16x8xi32>
    %62 = arith.cmpi slt, %58, %61 : vector<2x16x8xi32>
    %c0_i32_16 = arith.constant 0 : i32
    %63 = arith.cmpi slt, %56, %c0_i32_16 : i32
    %64 = vector.broadcast %63 : i1 to vector<2x16x8xi1>
    %65 = vector.broadcast %64 : vector<2x16x8xi1> to vector<2x16x8xi1>
    %66 = arith.xori %62, %65 : vector<2x16x8xi1>
    %67 = arith.andi %66, %60 : vector<2x16x8xi1>
    %68 = vector.broadcast %56 : i32 to vector<2x16x8xi32>
    %69 = arith.addi %58, %68 : vector<2x16x8xi32>
    %70 = arith.select %67, %69, %58 : vector<2x16x8xi1>, vector<2x16x8xi32>
    %71 = tpu.iota {dimensions = array<i32: 2>} : vector<2x16x8xi32>
    %72 = arith.cmpi sle, %71, %70 : vector<2x16x8xi32>
    %cst_17 = arith.constant -1.000000e+30 : f32
    %73 = vector.broadcast %cst_17 : f32 to vector<2x16x8xf32>
    %74 = arith.select %72, %53, %73 : vector<2x16x8xi1>, vector<2x16x8xf32>
    %cst_18 = arith.constant dense<0xFF800000> : vector<2x16xf32>
    %75 = vector.multi_reduction <maximumf>, %74, %cst_18 [2] : vector<2x16x8xf32> to vector<2x16xf32>
    %76 = vector.shape_cast %75 : vector<2x16xf32> to vector<2x16x1xf32>
    %77 = vector.broadcast %76 : vector<2x16x1xf32> to vector<2x16x8xf32>
    %78 = arith.subf %74, %77 : vector<2x16x8xf32>
    %79 = math.exp %78 : vector<2x16x8xf32>
    %cst_19 = arith.constant dense<0.000000e+00> : vector<2x16xf32>
    %80 = vector.multi_reduction <add>, %79, %cst_19 [2] : vector<2x16x8xf32> to vector<2x16xf32>
    %81 = vector.shape_cast %80 : vector<2x16xf32> to vector<2x16x1xf32>
    %82 = tpu.reciprocal %81 {approx = true} : vector<2x16x1xf32> -> vector<2x16x1xf32>
    %83 = vector.broadcast %82 : vector<2x16x1xf32> to vector<2x16x8xf32>
    %84 = arith.mulf %79, %83 : vector<2x16x8xf32>
    %85 = arith.truncf %84 : vector<2x16x8xf32> to vector<2x16x8xbf16>
    "tpu.trace_start"() <{level = 10 : i32, message = "gqk,gkd->gqd"}> : () -> ()
    %cst_20 = arith.constant dense<0.000000e+00> : vector<2x16x16xf32>
    %86 = tpu.matmul %85, %52, %cst_20 {dimension_numbers = #tpu.dot_dimension_numbers<[2], [1], [1], [2], [0, 0, 0, 1, 1, 2], [0], [0]>} : vector<2x16x8xbf16>, vector<2x8x16xbf16>, vector<2x16x16xf32> -> vector<2x16x16xf32>
    "tpu.trace_stop"() : () -> ()
    %87 = vector.extract_strided_slice %86 {offsets = [0, 0, 0], sizes = [1, 8, 16], strides = [1, 1, 1]} : vector<2x16x16xf32> to vector<1x8x16xf32>
    %88 = vector.shape_cast %87 : vector<1x8x16xf32> to vector<8x16xf32>
    %89 = vector.extract_strided_slice %86 {offsets = [0, 8, 0], sizes = [1, 8, 16], strides = [1, 1, 1]} : vector<2x16x16xf32> to vector<1x8x16xf32>
    %90 = vector.shape_cast %89 : vector<1x8x16xf32> to vector<8x16xf32>
    %91 = vector.extract_strided_slice %86 {offsets = [1, 0, 0], sizes = [1, 8, 16], strides = [1, 1, 1]} : vector<2x16x16xf32> to vector<1x8x16xf32>
    %92 = vector.shape_cast %91 : vector<1x8x16xf32> to vector<8x16xf32>
    %93 = vector.extract_strided_slice %86 {offsets = [1, 8, 0], sizes = [1, 8, 16], strides = [1, 1, 1]} : vector<2x16x16xf32> to vector<1x8x16xf32>
    %94 = vector.shape_cast %93 : vector<1x8x16xf32> to vector<8x16xf32>
    %95 = tpu.concatenate %88, %90, %92, %94 in 1 : vector<8x16xf32>, vector<8x16xf32>, vector<8x16xf32>, vector<8x16xf32> -> vector<8x64xf32>
    %96 = arith.truncf %95 : vector<8x64xf32> to vector<8x64xbf16>
    %c0_21 = arith.constant 0 : index
    %c0_22 = arith.constant 0 : index
    %97 = vector.load %arg4[%c0_21, %c0_22] : memref<64x64xbf16, #tpu.memory_space<vmem>>, vector<64x64xbf16>
    %cst_23 = arith.constant dense<0.000000e+00> : vector<8x64xf32>
    %98 = tpu.matmul %96, %97, %cst_23 {dimension_numbers = #tpu.dot_dimension_numbers<[1], [0], [0], [1], [0, 0, 1, 1], [], []>} : vector<8x64xbf16>, vector<64x64xbf16>, vector<8x64xf32> -> vector<8x64xf32>
    %99 = arith.addf %0, %98 : vector<8x64xf32>
    %100 = arith.mulf %99, %99 : vector<8x64xf32>
    %cst_24 = arith.constant dense<0.000000e+00> : vector<8xf32>
    %101 = vector.multi_reduction <add>, %100, %cst_24 [1] : vector<8x64xf32> to vector<8xf32>
    %102 = vector.shape_cast %101 : vector<8xf32> to vector<8x1xf32>
    %cst_25 = arith.constant 6.400000e+01 : f32
    %103 = vector.broadcast %cst_25 : f32 to vector<8x1xf32>
    %104 = arith.divf %102, %103 : vector<8x1xf32>
    %cst_26 = arith.constant 9.99999974E-6 : f32
    %105 = vector.broadcast %cst_26 : f32 to vector<8x1xf32>
    %106 = arith.addf %104, %105 : vector<8x1xf32>
    %107 = math.rsqrt %106 : vector<8x1xf32>
    %108 = vector.broadcast %107 : vector<8x1xf32> to vector<8x64xf32>
    %109 = arith.mulf %99, %108 : vector<8x64xf32>
    %110 = arith.truncf %109 : vector<8x64xf32> to vector<8x64xbf16>
    %c0_27 = arith.constant 0 : index
    %c0_28 = arith.constant 0 : index
    %111 = vector.load %arg5[%c0_27, %c0_28] : memref<64x384xbf16, #tpu.memory_space<vmem>>, vector<64x384xbf16>
    %cst_29 = arith.constant dense<0.000000e+00> : vector<8x384xf32>
    %112 = tpu.matmul %110, %111, %cst_29 {dimension_numbers = #tpu.dot_dimension_numbers<[1], [0], [0], [1], [0, 0, 1, 1], [], []>} : vector<8x64xbf16>, vector<64x384xbf16>, vector<8x384xf32> -> vector<8x384xf32>
    %113 = vector.extract_strided_slice %112 {offsets = [0, 0], sizes = [8, 192], strides = [1, 1]} : vector<8x384xf32> to vector<8x192xf32>
    %114 = vector.extract_strided_slice %112 {offsets = [0, 192], sizes = [8, 192], strides = [1, 1]} : vector<8x384xf32> to vector<8x192xf32>
    %cst_30 = arith.constant 0.000000e+00 : f32
    %115 = vector.broadcast %cst_30 : f32 to vector<8x192xf32>
    %116 = arith.subf %115, %113 : vector<8x192xf32>
    %117 = math.exp %116 : vector<8x192xf32>
    %cst_31 = arith.constant 1.000000e+00 : f32
    %118 = vector.broadcast %cst_31 : f32 to vector<8x192xf32>
    %119 = arith.addf %118, %117 : vector<8x192xf32>
    %120 = tpu.reciprocal %119 {approx = true} : vector<8x192xf32> -> vector<8x192xf32>
    %121 = arith.mulf %113, %120 : vector<8x192xf32>
    %122 = arith.mulf %121, %114 : vector<8x192xf32>
    %123 = arith.truncf %122 : vector<8x192xf32> to vector<8x192xbf16>
    %c0_32 = arith.constant 0 : index
    %c0_33 = arith.constant 0 : index
    %124 = vector.load %arg6[%c0_32, %c0_33] : memref<192x64xbf16, #tpu.memory_space<vmem>>, vector<192x64xbf16>
    %cst_34 = arith.constant dense<0.000000e+00> : vector<8x64xf32>
    %125 = tpu.matmul %123, %124, %cst_34 {dimension_numbers = #tpu.dot_dimension_numbers<[1], [0], [0], [1], [0, 0, 1, 1], [], []>} : vector<8x192xbf16>, vector<192x64xbf16>, vector<8x64xf32> -> vector<8x64xf32>
    %126 = arith.addf %99, %125 : vector<8x64xf32>
    %c0_35 = arith.constant 0 : index
    %c0_36 = arith.constant 0 : index
    %127 = vector.load %arg7[%c0_35, %c0_36] : memref<8x64xf32, #tpu.memory_space<vmem>>, vector<8x64xf32>
    tpu.vector_store %arg7[%c0_35, %c0_36], %126 {strides = array<i32>} : memref<8x64xf32, #tpu.memory_space<vmem>>, vector<8x64xf32>,
    return
  }
  func.func @transform_0(%arg0: i32) -> (i32, i32) {
    %c0_i32 = arith.constant 0 : i32
    %c0_i32_0 = arith.constant 0 : i32
    return %arg0, %c0_i32 : i32, i32
  }
  func.func @transform_1(%arg0: i32) -> (i32, i32, i32) {
    %c0_i32 = arith.constant 0 : i32
    %c0_i32_0 = arith.constant 0 : i32
    %c0_i32_1 = arith.constant 0 : i32
    %c0_i32_2 = arith.constant 0 : i32
    return %c0_i32, %c0_i32_0, %c0_i32_1 : i32, i32, i32
  }
  func.func @transform_2(%arg0: i32) -> (i32, i32) {
    %c0_i32 = arith.constant 0 : i32
    %c0_i32_0 = arith.constant 0 : i32
    %c0_i32_1 = arith.constant 0 : i32
    return %c0_i32, %c0_i32_0 : i32, i32
  }
  func.func @transform_3(%arg0: i32) -> (i32, i32) {
    %c0_i32 = arith.constant 0 : i32
    %c0_i32_0 = arith.constant 0 : i32
    %c0_i32_1 = arith.constant 0 : i32
    return %c0_i32, %c0_i32_0 : i32, i32
  }
  func.func @transform_4(%arg0: i32) -> (i32, i32) {
    %c0_i32 = arith.constant 0 : i32
    %c0_i32_0 = arith.constant 0 : i32
    %c0_i32_1 = arith.constant 0 : i32
    return %c0_i32, %c0_i32_0 : i32, i32
  }
  func.func @transform_5(%arg0: i32) -> (i32, i32) {
    %c0_i32 = arith.constant 0 : i32
    %c0_i32_0 = arith.constant 0 : i32
    %c0_i32_1 = arith.constant 0 : i32
    return %c0_i32, %c0_i32_0 : i32, i32
  }
  func.func @transform_6(%arg0: i32) -> (i32, i32) {
    %c0_i32 = arith.constant 0 : i32
    %c0_i32_0 = arith.constant 0 : i32
    return %arg0, %c0_i32 : i32, i32
  }
}

</mosaic_0001>

<llo_original>
// kernel: transformer_block.1
$region0: #{transformer_block.1}
  #allocation0 [shape = 'u32[]', space=smem, size = 0x4, offset = 0x4, fixed_abs, tag = 'smem constant byte address 0x4 - core index']
  #allocation1 [shape = 'u32[72,128]{1,0:T(1,128)}', space=vmem, size = 0x9000, scoped, tag = 'internal scratch']
  %s0 = inlined_call_operand.hbm [shape: f32[16,64], index: 0, kind: input, shape index: {}]
  %s1 = inlined_call_operand.hbm [shape: f32[3,8,128], index: 1, kind: input, shape index: {}]
  %s2 = inlined_call_operand.vmem [shape: bf16[64,128], index: 2, kind: input, shape index: {}]
  %s3 = inlined_call_operand.vmem [shape: bf16[64,64], index: 3, kind: input, shape index: {}]
  %s4 = inlined_call_operand.vmem [shape: bf16[64,384], index: 4, kind: input, shape index: {}]
  %s5 = inlined_call_operand.vmem [shape: bf16[192,64], index: 5, kind: input, shape index: {}]
  %s6 = inlined_call_operand.hbm [shape: f32[16,64], index: 6, kind: output, shape index: {}]
  %s7 = sld [smem:[#allocation0]]
  $region65: #{transformer_block.1} parent=0
    _
  %s9 = ssub.s32 1, %s7
  %s10 = scalar_select 0, %s9, %s7
  $region1: #{transformer_block.1} parent=0
    #allocation2 [shape = 'u8[8192]{0}', space=vmem, size = 0x2000, scoped, tag = 'input window, operand 0']
    #allocation3 [shape = 's32[2]{0}', space=sflag, size = 0x8, scoped, tag = 'scoped memory for transformer_block.1']
    #allocation4 [shape = 's32[2]{0}', space=sflag, size = 0x8, scoped, tag = 'scoped memory for transformer_block.1']
    #allocation5 [shape = 'u8[12288]{0}', space=vmem, size = 0x3000, scoped, tag = 'input window, operand 1, single buffered']
    #allocation6 [shape = 's32[1]{0}', space=sflag, size = 0x4, scoped, tag = 'scoped memory for transformer_block.1']
    #allocation7 [shape = 'u8[8192]{0}', space=vmem, size = 0x2000, scoped, tag = 'output window, operand 0']
    %11 = vsyncpa [#allocation3], 0
    %s12 = scalar_lea.sflag [#allocation3], 1
    %13 = vsyncpa %s12, 0
    %14 = vsyncpa [#allocation6], 0
    %15 = vsyncpa [#allocation4], 0
    %s16 = scalar_lea.sflag [#allocation4], 1
    %17 = vsyncpa %s16, 0
    loop: start=0, step=1, limit=4
    $region2: #{transformer_block.1} parent=1 // loop_pre_header
      _
    $region3: #{transformer_block.1} parent=1 // loop_header
      %s19 = sphi 0, %s23
      %p20 = scmp.ge.s32.totalorder %s19, 4
      %s29 = sphi 0, %s31
      %s32 = sphi 0, %s29
      %s33 = sphi 0, %s32
      %s49 = sphi 0, %s33
      %s53 = sphi 0, %s53
      %s55 = sphi 0, %s53
      %s56 = sphi 0, %s55
      %s70 = sphi 0, %s56
      %s74 = sphi 0, %s74
      %s76 = sphi 0, %s74
      %s77 = sphi 0, %s76
      %s91 = sphi 0, %s77
      %s95 = sphi 0, %s95
      %s97 = sphi 0, %s95
      %s98 = sphi 0, %s97
      %s112 = sphi 0, %s98
      %s116 = sphi 0, %s116
      %s118 = sphi 0, %s116
      %s119 = sphi 0, %s118
      %s133 = sphi 0, %s119
      %s137 = sphi 0, %s137
      %s139 = sphi 0, %s137
      %s140 = sphi 0, %s139
      %s154 = sphi 0, %s140
      %s160 = sphi 0, %s162
      %s163 = sphi 0, %s160
      %s164 = sphi 0, %s163
      %s180 = sphi 0, %s164
    $region4: #{transformer_block.1} parent=1 // loop_header_branch
      %22 = sbr.rel (%p20) target = $region8
    $region5: #{transformer_block.1} parent=1 // loop_body
      %s24 = ssub.s32 %s19, 1
      %s25 = ssub.s32 %s19, 2
      %s26 = sadd.s32 %s19, 1
      %s27 = ssub.s32 %s19, %s26
      %p28 = scmp.eq.s32.totalorder %s27, 0
      %s30 = sadd.s32 %s29, 1
      %s31 = scalar_select %p28, %s29, %s30
      %p34 = pneg %p28
      %p35 = scmp.eq.s32.totalorder %s19, 1
      %p36 = por %p34, %p35
      %p37 = scmp.ne.s32.totalorder %s29, %s32
      %p38 = scmp.eq.s32.totalorder %s19, 0
      %p39 = por %p37, %p38
      %p40 = scmp.ne.s32.totalorder %s29, %s32
      %p41 = scmp.eq.s32.totalorder %s24, 1
      %p42 = por %p40, %p41
      %p43 = scmp.ne.s32.totalorder %s32, %s33
      %p44 = scmp.eq.s32.totalorder %s24, 0
      %p45 = por %p43, %p44
      %p46 = scmp.ne.s32.totalorder %s32, %s33
      %p47 = scmp.eq.s32.totalorder %s25, 1
      %p48 = por %p46, %p47
      %p50 = scmp.ne.s32.totalorder %s33, %s49
      %p51 = scmp.eq.s32.totalorder %s25, 0
      %p52 = por %p50, %p51
      %s54 = sadd.s32 %s53, 1
      %p57 = scmp.eq.s32.totalorder %s19, 1
      %p58 = scmp.ne.s32.totalorder %s53, %s55
      %p59 = scmp.eq.s32.totalorder %s19, 0
      %p60 = por %p58, %p59
      %p61 = scmp.ne.s32.totalorder %s53, %s55
      %p62 = scmp.eq.s32.totalorder %s24, 1
      %p63 = por %p61, %p62
      %p64 = scmp.ne.s32.totalorder %s55, %s56
      %p65 = scmp.eq.s32.totalorder %s24, 0
      %p66 = por %p64, %p65
      %p67 = scmp.ne.s32.totalorder %s55, %s56
      %p68 = scmp.eq.s32.totalorder %s25, 1
      %p69 = por %p67, %p68
      %p71 = scmp.ne.s32.totalorder %s56, %s70
      %p72 = scmp.eq.s32.totalorder %s25, 0
      %p73 = por %p71, %p72
      %s75 = sadd.s32 %s74, 1
      %p78 = scmp.eq.s32.totalorder %s19, 1
      %p79 = scmp.ne.s32.totalorder %s74, %s76
      %p80 = scmp.eq.s32.totalorder %s19, 0
      %p81 = por %p79, %p80
      %p82 = scmp.ne.s32.totalorder %s74, %s76
      %p83 = scmp.eq.s32.totalorder %s24, 1
      %p84 = por %p82, %p83
      %p85 = scmp.ne.s32.totalorder %s76, %s77
      %p86 = scmp.eq.s32.totalorder %s24, 0
      %p87 = por %p85, %p86
      %p88 = scmp.ne.s32.totalorder %s76, %s77
      %p89 = scmp.eq.s32.totalorder %s25, 1
      %p90 = por %p88, %p89
      %p92 = scmp.ne.s32.totalorder %s77, %s91
      %p93 = scmp.eq.s32.totalorder %s25, 0
      %p94 = por %p92, %p93
      %s96 = sadd.s32 %s95, 1
      %p99 = scmp.eq.s32.totalorder %s19, 1
      %p100 = scmp.ne.s32.totalorder %s95, %s97
      %p101 = scmp.eq.s32.totalorder %s19, 0
      %p102 = por %p100, %p101
      %p103 = scmp.ne.s32.totalorder %s95, %s97
      %p104 = scmp.eq.s32.totalorder %s24, 1
      %p105 = por %p103, %p104
      %p106 = scmp.ne.s32.totalorder %s97, %s98
      %p107 = scmp.eq.s32.totalorder %s24, 0
      %p108 = por %p106, %p107
      %p109 = scmp.ne.s32.totalorder %s97, %s98
      %p110 = scmp.eq.s32.totalorder %s25, 1
      %p111 = por %p109, %p110
      %p113 = scmp.ne.s32.totalorder %s98, %s112
      %p114 = scmp.eq.s32.totalorder %s25, 0
      %p115 = por %p113, %p114
      %s117 = sadd.s32 %s116, 1
      %p120 = scmp.eq.s32.totalorder %s19, 1
      %p121 = scmp.ne.s32.totalorder %s116, %s118
      %p122 = scmp.eq.s32.totalorder %s19, 0
      %p123 = por %p121, %p122
      %p124 = scmp.ne.s32.totalorder %s116, %s118
      %p125 = scmp.eq.s32.totalorder %s24, 1
      %p126 = por %p124, %p125
      %p127 = scmp.ne.s32.totalorder %s118, %s119
      %p128 = scmp.eq.s32.totalorder %s24, 0
      %p129 = por %p127, %p128
      %p130 = scmp.ne.s32.totalorder %s118, %s119
      %p131 = scmp.eq.s32.totalorder %s25, 1
      %p132 = por %p130, %p131
      %p134 = scmp.ne.s32.totalorder %s119, %s133
      %p135 = scmp.eq.s32.totalorder %s25, 0
      %p136 = por %p134, %p135
      %s138 = sadd.s32 %s137, 1
      %p141 = scmp.eq.s32.totalorder %s19, 1
      %p142 = scmp.ne.s32.totalorder %s137, %s139
      %p143 = scmp.eq.s32.totalorder %s19, 0
      %p144 = por %p142, %p143
      %p145 = scmp.ne.s32.totalorder %s137, %s139
      %p146 = scmp.eq.s32.totalorder %s24, 1
      %p147 = por %p145, %p146
      %p148 = scmp.ne.s32.totalorder %s139, %s140
      %p149 = scmp.eq.s32.totalorder %s24, 0
      %p150 = por %p148, %p149
      %p151 = scmp.ne.s32.totalorder %s139, %s140
      %p152 = scmp.eq.s32.totalorder %s25, 1
      %p153 = por %p151, %p152
      %p155 = scmp.ne.s32.totalorder %s140, %s154
      %p156 = scmp.eq.s32.totalorder %s25, 0
      %p157 = por %p155, %p156
      %s158 = ssub.s32 %s19, %s26
      %p159 = scmp.eq.s32.totalorder %s158, 0
      %s161 = sadd.s32 %s160, 1
      %s162 = scalar_select %p159, %s160, %s161
      %p165 = pneg %p159
      %p166 = scmp.eq.s32.totalorder %s19, 1
      %p167 = por %p165, %p166
      %p168 = scmp.ne.s32.totalorder %s160, %s163
      %p169 = scmp.eq.s32.totalorder %s19, 0
      %p170 = por %p168, %p169
      %p171 = scmp.ne.s32.totalorder %s160, %s163
      %p172 = scmp.eq.s32.totalorder %s24, 1
      %p173 = por %p171, %p172
      %p174 = scmp.ne.s32.totalorder %s163, %s164
      %p175 = scmp.eq.s32.totalorder %s24, 0
      %p176 = por %p174, %p175
      %p177 = scmp.ne.s32.totalorder %s163, %s164
      %p178 = scmp.eq.s32.totalorder %s25, 1
      %p179 = por %p177, %p178
      %p181 = scmp.ne.s32.totalorder %s164, %s180
      %p182 = scmp.eq.s32.totalorder %s25, 0
      %p183 = por %p181, %p182
      %p184 = scmp.le.s32.totalorder 1, %s19
      %p185 = scmp.lt.s32.totalorder %s19, 3
      %p186 = pnand %p184, %p185
      %p187 = pneg %p186
      // Predicated region
      $region9: #{transformer_block.1} parent=5 // pred_check
        _
      $region10: #{transformer_block.1} parent=5 // pred_check_branch
        %189 = sbr.rel (%p186) target = $region12
      $region11: #{transformer_block.1} parent=5 // pred_region
        %s190 = ssub.s32 %s19, 1
        // Predicated region
        $region13: #{transformer_block.1} parent=11 // pred_check
          %p191 = pneg %p66
        $region14: #{transformer_block.1} parent=11 // pred_check_branch
          %193 = sbr.rel (%p191) target = $region16
        $region15: #{transformer_block.1} parent=11 // pred_region
          %195 = vsyncadd [#allocation6], 0
          %s196 = sshll.u32 %s1, 4
          %s197 = int_to_ptr.hbm [resolvable:$true] %s196
          %s198 = sshll.u32 [#allocation5], 4
          %s199 = int_to_ptr.vmem [resolvable:$true] %s198
          %204 = dma.hbm_to_vmem [thread:$0]  %s197, 384, %s199, [#allocation6], 128, 128, 8
        $region16: #{transformer_block.1} parent=11 // pred_fallthru
          _
        // Predicated region
        $region17: #{transformer_block.1} parent=11 // pred_check
          %p205 = pneg %p87
        $region18: #{transformer_block.1} parent=11 // pred_check_branch
          %207 = sbr.rel (%p205) target = $region20
        $region19: #{transformer_block.1} parent=11 // pred_region
          _
        $region20: #{transformer_block.1} parent=11 // pred_fallthru
          _
        // Predicated region
        $region21: #{transformer_block.1} parent=11 // pred_check
          %p208 = pneg %p108
        $region22: #{transformer_block.1} parent=11 // pred_check_branch
          %210 = sbr.rel (%p208) target = $region24
        $region23: #{transformer_block.1} parent=11 // pred_region
          _
        $region24: #{transformer_block.1} parent=11 // pred_fallthru
          _
        // Predicated region
        $region25: #{transformer_block.1} parent=11 // pred_check
          %p211 = pneg %p129
        $region26: #{transformer_block.1} parent=11 // pred_check_branch
          %213 = sbr.rel (%p211) target = $region28
        $region27: #{transformer_block.1} parent=11 // pred_region
          _
        $region28: #{transformer_block.1} parent=11 // pred_fallthru
          _
        // Predicated region
        $region29: #{transformer_block.1} parent=11 // pred_check
          %p214 = pneg %p150
        $region30: #{transformer_block.1} parent=11 // pred_check_branch
          %216 = sbr.rel (%p214) target = $region32
        $region31: #{transformer_block.1} parent=11 // pred_region
          _
        $region32: #{transformer_block.1} parent=11 // pred_fallthru
          _
      $region12: #{transformer_block.1} parent=5 // pred_fallthru
        _
      %p217 = scmp.lt.s32.totalorder %s19, 2
      // Predicated region
      $region33: #{transformer_block.1} parent=5 // pred_check
        %p218 = pneg %p217
      $region34: #{transformer_block.1} parent=5 // pred_check_branch
        %220 = sbr.rel (%p218) target = $region36
      $region35: #{transformer_block.1} parent=5 // pred_region
        // Predicated region
        $region37: #{transformer_block.1} parent=35 // pred_check
          %p221 = pneg %p39
        $region38: #{transformer_block.1} parent=35 // pred_check_branch
          %223 = sbr.rel (%p221) target = $region40
        $region39: #{transformer_block.1} parent=35 // pred_region
          %s224 = sand.u32 %s29, 1
          %s225 = scalar_lea.sflag [#allocation3], %s224
          %s226 = sand.u32 %s29, 1
          %s227 = smul.addr %s226, 8
          %s228 = scalar_lea.vmem [#allocation2], %s227
          %230 = vsyncadd %s225, 0
          %s231 = smul.addr %s19, 8
          %s232 = scalar_lea.hbm %s0, %s231
          %s234 = sshll.u32 %s232, 4
          %s235 = int_to_ptr.hbm [resolvable:$true] %s234
          %s236 = sshll.u32 %s228, 4
          %s237 = int_to_ptr.vmem [resolvable:$true] %s236
          %239 = dma.hbm_to_vmem [thread:$0]  %s235, 128, %s237, %s225
        $region40: #{transformer_block.1} parent=35 // pred_fallthru
          _
      $region36: #{transformer_block.1} parent=5 // pred_fallthru
        _
      %p240 = scmp.le.s32.totalorder 1, %s19
      %p241 = scmp.lt.s32.totalorder %s19, 3
      %p242 = pnand %p240, %p241
      %p243 = pneg %p242
      // Predicated region
      $region41: #{transformer_block.1} parent=5 // pred_check
        _
      $region42: #{transformer_block.1} parent=5 // pred_check_branch
        %245 = sbr.rel (%p242) target = $region44
      $region43: #{transformer_block.1} parent=5 // pred_region
        %s246 = ssub.s32 %s19, 1
        %s247 = sand.u32 %s32, 1
        %s248 = scalar_lea.sflag [#allocation3], %s247
        %s249 = sand.u32 %s32, 1
        %s250 = smul.addr %s249, 8
        %s251 = scalar_lea.vmem [#allocation2], %s250
        // Predicated region
        $region45: #{transformer_block.1} parent=43 // pred_check
          %p252 = pneg %p45
        $region46: #{transformer_block.1} parent=43 // pred_check_branch
          %254 = sbr.rel (%p252) target = $region48
        $region47: #{transformer_block.1} parent=43 // pred_region
          %256 = dma.done %s248, 128
        $region48: #{transformer_block.1} parent=43 // pred_fallthru
          _
        // Predicated region
        $region49: #{transformer_block.1} parent=43 // pred_check
          %p257 = pneg %p66
        $region50: #{transformer_block.1} parent=43 // pred_check_branch
          %259 = sbr.rel (%p257) target = $region52
        $region51: #{transformer_block.1} parent=43 // pred_region
          %261 = dma.done [#allocation6], 384
        $region52: #{transformer_block.1} parent=43 // pred_fallthru
          _
        %s262 = sand.u32 %s32, 1
        %s263 = scalar_lea.sflag [#allocation3], %s262
        %s264 = sand.u32 %s32, 1
        %s265 = smul.addr %s264, 8
        %s266 = scalar_lea.vmem [#allocation2], %s265
        %p267 = pneg %p45
        %p268 = pneg %p42
        %p269 = pneg %p66
        %p270 = pneg %p63
        %p271 = pneg %p87
        %p272 = pneg %p84
        %p273 = pneg %p108
        %p274 = pneg %p105
        %p275 = pneg %p129
        %p276 = pneg %p126
        %p277 = pneg %p150
        %p278 = pneg %p147
        %p279 = pneg %p176
        %p280 = pneg %p173
        %s281 = sand.u32 %s163, 1
        %s282 = scalar_lea.sflag [#allocation4], %s281
        %s283 = sand.u32 %s163, 1
        %s284 = smul.addr %s283, 8
        %s285 = scalar_lea.vmem [#allocation7], %s284
        %v287 = vld [vmem:[%s251] sm:$0xff]
        %v288 = vmul.f32 %v287, %v287
        %vm289 = vcmask 523264
        %v290 = vsel %vm289, %v288, 0.0
        %291 = vadd.xlane.f32.xlu0 %v290
        %v292 = vpop.xlane.xlu0 %291
        %v293 = vrcp.pop 64.0
        %v294 = vmul.f32 64.0, %v293
        %v295 = vsub.f32 1.0, %v294
        %v296 = vmul.f32 %v293, %v295
        %v297 = vadd.f32 %v293, %v296
        %vm298 = vweird.f32 %v293
        %v299 = vsel %vm298, %v293, %v297
        %v300 = vmul.f32 %v292, %v299
        %v301 = vadd.f32 %v300, 1e-05
        %v302 = vrsqrt.pop %v301
        %v303 = vmul.f32 %v302, %v301
        %v304 = vmul.f32 %v303, %v302
        %v305 = vmul.f32 0.5, %v304
        %v306 = vsub.f32 1.5, %v305
        %v307 = vmul.f32 %v302, %v306
        %vm308 = vweird.f32 %v301
        %vm309 = vweird.f32 %v302
        %vm310 = vmor %vm308, %vm309
        %v311 = vsel %vm310, %v302, %v307
        %v312 = vmul.f32 %v287, %v311
        %v313 = vpack.c.bf16 %v312, %v312
        %v314 = vld [vmem:[%s2] sm:$0xf]
        %v315 = vld [vmem:[%s2 + $0x4] sm:$0xf]
        %v316 = vld [vmem:[%s2 + $0x8] sm:$0xf]
        %v317 = vld [vmem:[%s2 + $0xc] sm:$0xf]
        %v318 = vld [vmem:[%s2 + $0x10] sm:$0xf]
        %v319 = vld [vmem:[%s2 + $0x14] sm:$0xf]
        %v320 = vld [vmem:[%s2 + $0x18] sm:$0xf]
        %v321 = vld [vmem:[%s2 + $0x1c] sm:$0xf]
        %v330 = vunpack.c.l.b16 %v314
        %v331 = vunpack.c.l.b16 %v315
        %v332 = vunpack.c.l.b16 %v316
        %v333 = vunpack.c.l.b16 %v317
        %v334 = vunpack.c.l.b16 %v318
        %v335 = vunpack.c.l.b16 %v319
        %v336 = vunpack.c.l.b16 %v320
        %v337 = vunpack.c.l.b16 %v321
        %v338 = vpack.c.b16 %v331, %v330
        %v339 = vpack.c.b16 %v333, %v332
        %v340 = vpack.c.b16 %v335, %v334
        %v341 = vpack.c.b16 %v337, %v336
        %v347 = vsel %vm289, %v313, 0
        %349 = vmatpush.bf16.msra.mxu0 0
        %350 = vmatpush.bf16.msra.mxu0 0
        %351 = vmatpush.bf16.msra.mxu0 0
        %352 = vmatpush.bf16.msra.mxu0 0
        %353 = vmatpush.bf16.msra.mxu0 %v341
        %354 = vmatpush.bf16.msra.mxu0 %v340
        %355 = vmatpush.bf16.msra.mxu0 %v339
        %356 = vmatpush.bf16.msra.mxu0 %v338
        %357 = vmatmul.bf16.gmra.mxu0 %v347
        %v358 = vpop.f32.mrf.mxu0
        %v359 = vadd.f32 0.0, %v358
        %v360 = vpop.f32.mrf.mxu0
        %361 = vdwg.mxu0
        %v362 = vld [vmem:[#allocation5] sm:$0xff]
        %v363 = vmul.f32 %v359, %v362
        %365 = vrot.lane.b32.xlu0 %v359, 120
        %v366 = vpop.permute.xlu0 %365
        %s368 = scalar_lea.vmem [#allocation5], 8
        %v369 = vld [vmem:[%s368] sm:$0xff]
        %v370 = vmul.f32 %v366, %v369
        %v371 = vadd.f32 %v363, %v370
        %372 = vrot.lane.b32.xlu0 %v359, 8
        %v373 = vpop.permute.xlu0 %372
        %vm375 = vcmask 64512
        %s376 = scalar_lea.vmem [#allocation5], 16
        %v377 = vld [vmem:[%s376] sm:$0xff]
        %v378 = vmul.f32 %v373, %v377
        %v379 = vadd.f32 %v371, %v378
        %381 = vrot.lane.b32.xlu0 %v379, 112
        %v382 = vpop.permute.xlu0 %381
        %384 = vrot.lane.b32.xlu0 %v379, 96
        %v385 = vpop.permute.xlu0 %384
        %386 = vrot.lane.b32.xlu0 %v382, 96
        %v387 = vpop.permute.xlu0 %386
        %v390 = vpack.c.bf16 %v379, %v379
        %v391 = vpack.c.bf16 %v382, %v382
        %v392 = vpack.c.bf16 %v385, %v385
        %v393 = vpack.c.bf16 %v387, %v387
        %v396 = vunpack.c.l.b16 %v390
        %v397 = vunpack.c.l.b16 %v391
        %v398 = vpack.c.b16 %v397, %v396
        %v399 = vpack.c.b16 %v396, %v396
        %400 = vrot.lane.b32.xlu0 %v399, 64
        %v401 = vpop.permute.xlu0 %400
        %vm402 = vcmask 130048
        %v404 = vsel %vm402, %v398, 0
        %v407 = vsel %vm402, %v401, 0
        %409 = vmatpush.bf16.xpose.msra.mxu0 0
        %410 = vmatpush.bf16.xpose.msra.mxu0 0
        %411 = vmatpush.bf16.xpose.msra.mxu0 0
        %412 = vmatpush.bf16.xpose.msra.mxu0 0
        %413 = vmatpush.bf16.xpose.msra.mxu0 0
        %414 = vmatpush.bf16.xpose.msra.mxu0 0
        %415 = vmatpush.bf16.xpose.msra.mxu0 0
        %416 = vmatpush.bf16.xpose.msra.mxu0 %v407
        %417 = vmatmul.bf16.gmra.mxu0 %v404
        %v418 = vpop.f32.mrf.mxu0
        %v419 = vadd.f32 0.0, %v418
        %v420 = vpop.f32.mrf.mxu0
        %v421 = vadd.f32 0.0, %v420
        %422 = vdwg.mxu0
        %v425 = vunpack.c.l.b16 %v392
        %v426 = vunpack.c.l.b16 %v393
        %v427 = vpack.c.b16 %v426, %v425
        %v428 = vpack.c.b16 %v397, %v397
        %429 = vrot.lane.b32.xlu0 %v428, 64
        %v430 = vpop.permute.xlu0 %429
        %v432 = vsel %vm402, %v427, 0
        %v435 = vsel %vm402, %v430, 0
        %437 = vmatpush.bf16.xpose.msra.mxu0 0
        %438 = vmatpush.bf16.xpose.msra.mxu0 0
        %439 = vmatpush.bf16.xpose.msra.mxu0 0
        %440 = vmatpush.bf16.xpose.msra.mxu0 0
        %441 = vmatpush.bf16.xpose.msra.mxu0 0
        %442 = vmatpush.bf16.xpose.msra.mxu0 0
        %443 = vmatpush.bf16.xpose.msra.mxu0 0
        %444 = vmatpush.bf16.xpose.msra.mxu0 %v435
        %445 = vmatmul.bf16.gmra.mxu0 %v432
        %v446 = vpop.f32.mrf.mxu0
        %v447 = vadd.f32 0.0, %v446
        %v448 = vpop.f32.mrf.mxu0
        %v449 = vadd.f32 0.0, %v448
        %450 = vdwg.mxu0
        %v451 = vlaneseq
        %v452 = vshrl.u32 %v451, 7
        %v453 = vadd.s32 %v452, 8
        %vm454 = vcmp.lt.s32.totalorder %v452, 0
        %v455 = vsub.s32 0, %v452
        %v456 = vsel %vm454, %v455, %v452
        %v457 = vshrl.u32 %v456, 3
        %v458 = vand.u32 %v456, 7
        %v459 = vsub.s32 0, %v458
        %v460 = vsel %vm454, %v459, %v458
        %vm461 = vcmp.lt.s32.totalorder %v453, 0
        %v462 = vsub.s32 0, %v453
        %v463 = vsel %vm461, %v462, %v453
        %v464 = vshrl.u32 %v463, 3
        %v465 = vand.u32 %v463, 7
        %v466 = vsub.s32 0, %v465
        %v467 = vsel %vm461, %v466, %v465
        %vm468 = vcmp.ne.s32.totalorder %v460, 0
        %vm469 = vcmp.ne.s32.totalorder %v467, 0
        %vm470 = vcmp.lt.s32.totalorder %v460, 0
        %vm471 = vcmp.lt.s32.totalorder %v467, 0
        %vm472 = vmand %vm470, %vm468
        %vm473 = vmand %vm471, %vm469
        %v474 = vadd.s32 %v460, 8
        %v475 = vadd.s32 %v467, 8
        %v476 = vsel %vm472, %v474, %v460
        %v477 = vsel %vm473, %v475, %v467
        %v478 = vlaneseq
        %v479 = vand.u32 %v478, 127
        %vm480 = vcmp.le.s32.totalorder %v479, %v476
        %vm481 = vcmp.le.s32.totalorder %v479, %v477
        %v482 = vsel %vm480, %v419, -1e+30
        %v483 = vsel %vm481, %v421, -1e+30
        %v484 = vsel %vm480, %v447, -1e+30
        %v485 = vsel %vm481, %v449, -1e+30
        %v486 = vsel %vm375, %v482, -inf
        %487 = vmax.xlane.f32.xlu0 %v486
        %v488 = vpop.xlane.xlu0 %487
        %v489 = vsel %vm375, %v483, -inf
        %490 = vmax.xlane.f32.xlu0 %v489
        %v491 = vpop.xlane.xlu0 %490
        %v492 = vsel %vm375, %v484, -inf
        %493 = vmax.xlane.f32.xlu0 %v492
        %v494 = vpop.xlane.xlu0 %493
        %v495 = vsel %vm375, %v485, -inf
        %496 = vmax.xlane.f32.xlu0 %v495
        %v497 = vpop.xlane.xlu0 %496
        %v498 = vsub.f32 %v482, %v488
        %v499 = vsub.f32 %v483, %v491
        %v500 = vsub.f32 %v484, %v494
        %v501 = vsub.f32 %v485, %v497
        %v502 = vmul.f32 %v498, 1.442695
        %v503 = vpow.pop %v502
        %v504 = vmul.f32 %v499, 1.442695
        %v505 = vpow.pop %v504
        %v506 = vmul.f32 %v500, 1.442695
        %v507 = vpow.pop %v506
        %v508 = vmul.f32 %v501, 1.442695
        %v509 = vpow.pop %v508
        %v510 = vsel %vm375, %v503, 0.0
        %511 = vadd.xlane.f32.xlu0 %v510
        %v512 = vpop.xlane.xlu0 %511
        %v513 = vsel %vm375, %v505, 0.0
        %514 = vadd.xlane.f32.xlu0 %v513
        %v515 = vpop.xlane.xlu0 %514
        %v516 = vsel %vm375, %v507, 0.0
        %517 = vadd.xlane.f32.xlu0 %v516
        %v518 = vpop.xlane.xlu0 %517
        %v519 = vsel %vm375, %v509, 0.0
        %520 = vadd.xlane.f32.xlu0 %v519
        %v521 = vpop.xlane.xlu0 %520
        %v522 = vrcp.pop %v512
        %v523 = vrcp.pop %v515
        %v524 = vrcp.pop %v518
        %v525 = vrcp.pop %v521
        %v526 = vmul.f32 %v503, %v522
        %v527 = vmul.f32 %v505, %v523
        %v528 = vmul.f32 %v507, %v524
        %v529 = vmul.f32 %v509, %v525
        %v530 = vpack.c.bf16 %v526, %v526
        %v531 = vpack.c.bf16 %v527, %v527
        %v532 = vpack.c.bf16 %v528, %v528
        %v533 = vpack.c.bf16 %v529, %v529
        %v536 = vunpack.c.l.b16 %v530
        %v537 = vunpack.c.l.b16 %v531
        %v538 = vpack.c.b16 %v537, %v536
        %539 = vrot.lane.b32.xlu0 %v399, 32
        %v540 = vpop.permute.xlu0 %539
        %v542 = vsel %vm375, %v538, 0
        %vm544 = vcmask 1043456
        %v546 = vsel %vm544, %v540, 0
        %548 = vmatpush.bf16.msra.mxu0 0
        %549 = vmatpush.bf16.msra.mxu0 0
        %550 = vmatpush.bf16.msra.mxu0 0
        %551 = vmatpush.bf16.msra.mxu0 0
        %552 = vmatpush.bf16.msra.mxu0 0
        %553 = vmatpush.bf16.msra.mxu0 0
        %554 = vmatpush.bf16.msra.mxu0 0
        %555 = vmatpush.bf16.msra.mxu0 %v546
        %556 = vmatmul.bf16.gmra.mxu0 %v542
        %v557 = vpop.f32.mrf.mxu0
        %v558 = vadd.f32 0.0, %v557
        %v559 = vpop.f32.mrf.mxu0
        %v560 = vadd.f32 0.0, %v559
        %561 = vdwg.mxu0
        %v564 = vunpack.c.l.b16 %v532
        %v565 = vunpack.c.l.b16 %v533
        %v566 = vpack.c.b16 %v565, %v564
        %567 = vrot.lane.b32.xlu0 %v428, 32
        %v568 = vpop.permute.xlu0 %567
        %v570 = vsel %vm375, %v566, 0
        %v573 = vsel %vm544, %v568, 0
        %575 = vmatpush.bf16.msra.mxu0 0
        %576 = vmatpush.bf16.msra.mxu0 0
        %577 = vmatpush.bf16.msra.mxu0 0
        %578 = vmatpush.bf16.msra.mxu0 0
        %579 = vmatpush.bf16.msra.mxu0 0
        %580 = vmatpush.bf16.msra.mxu0 0
        %581 = vmatpush.bf16.msra.mxu0 0
        %582 = vmatpush.bf16.msra.mxu0 %v573
        %583 = vmatmul.bf16.gmra.mxu0 %v570
        %v584 = vpop.f32.mrf.mxu0
        %v585 = vadd.f32 0.0, %v584
        %v586 = vpop.f32.mrf.mxu0
        %v587 = vadd.f32 0.0, %v586
        %588 = vdwg.mxu0
        %590 = vrot.lane.b32.xlu0 %v560, 16
        %v591 = vpop.permute.xlu0 %590
        %594 = vrot.lane.b32.xlu0 %v585, 32
        %v595 = vpop.permute.xlu0 %594
        %598 = vrot.lane.b32.xlu0 %v587, 48
        %v599 = vpop.permute.xlu0 %598
        %v601 = vsel %vm402, %v558, %v591
        %vm602 = vcmask 261120
        %v603 = vsel %vm602, %v601, %v595
        %vm604 = vcmask 392192
        %v605 = vsel %vm604, %v603, %v599
        %v606 = vpack.c.bf16 %v605, %v605
        %v607 = vld [vmem:[%s3] sm:$0xf]
        %v608 = vld [vmem:[%s3 + $0x4] sm:$0xf]
        %v609 = vld [vmem:[%s3 + $0x8] sm:$0xf]
        %v610 = vld [vmem:[%s3 + $0xc] sm:$0xf]
        %v611 = vld [vmem:[%s3 + $0x10] sm:$0xf]
        %v612 = vld [vmem:[%s3 + $0x14] sm:$0xf]
        %v613 = vld [vmem:[%s3 + $0x18] sm:$0xf]
        %v614 = vld [vmem:[%s3 + $0x1c] sm:$0xf]
        %v623 = vunpack.c.l.b16 %v607
        %v624 = vunpack.c.l.b16 %v608
        %v625 = vunpack.c.l.b16 %v609
        %v626 = vunpack.c.l.b16 %v610
        %v627 = vunpack.c.l.b16 %v611
        %v628 = vunpack.c.l.b16 %v612
        %v629 = vunpack.c.l.b16 %v613
        %v630 = vunpack.c.l.b16 %v614
        %v631 = vpack.c.b16 %v624, %v623
        %v632 = vpack.c.b16 %v626, %v625
        %v633 = vpack.c.b16 %v628, %v627
        %v634 = vpack.c.b16 %v630, %v629
        %v640 = vsel %vm289, %v606, 0
        %642 = vmatpush.bf16.msra.mxu0 0
        %643 = vmatpush.bf16.msra.mxu0 0
        %644 = vmatpush.bf16.msra.mxu0 0
        %645 = vmatpush.bf16.msra.mxu0 0
        %646 = vmatpush.bf16.msra.mxu0 %v634
        %647 = vmatpush.bf16.msra.mxu0 %v633
        %648 = vmatpush.bf16.msra.mxu0 %v632
        %649 = vmatpush.bf16.msra.mxu0 %v631
        %650 = vmatmul.bf16.gmra.mxu0 %v640
        %v651 = vpop.f32.mrf.mxu0
        %v652 = vadd.f32 0.0, %v651
        %v653 = vpop.f32.mrf.mxu0
        %654 = vdwg.mxu0
        %v655 = vadd.f32 %v287, %v652
        %v656 = vmul.f32 %v655, %v655
        %v657 = vsel %vm289, %v656, 0.0
        %658 = vadd.xlane.f32.xlu0 %v657
        %v659 = vpop.xlane.xlu0 %658
        %v660 = vmul.f32 %v659, %v299
        %v661 = vadd.f32 %v660, 1e-05
        %v662 = vrsqrt.pop %v661
        %v663 = vmul.f32 %v662, %v661
        %v664 = vmul.f32 %v663, %v662
        %v665 = vmul.f32 0.5, %v664
        %v666 = vsub.f32 1.5, %v665
        %v667 = vmul.f32 %v662, %v666
        %vm668 = vweird.f32 %v661
        %vm669 = vweird.f32 %v662
        %vm670 = vmor %vm668, %vm669
        %v671 = vsel %vm670, %v662, %v667
        %v672 = vmul.f32 %v655, %v671
        %v673 = vpack.c.bf16 %v672, %v672
        %v674 = vld [vmem:[%s4] sm:$0xff]
        %v675 = vld [vmem:[%s4 + $0x8] sm:$0xf]
        %v676 = vld [vmem:[%s4 + $0xc] sm:$0xff]
        %v677 = vld [vmem:[%s4 + $0x14] sm:$0xf]
        %v678 = vld [vmem:[%s4 + $0x18] sm:$0xff]
        %v679 = vld [vmem:[%s4 + $0x20] sm:$0xf]
        %v680 = vld [vmem:[%s4 + $0x24] sm:$0xff]
        %v681 = vld [vmem:[%s4 + $0x2c] sm:$0xf]
        %v682 = vld [vmem:[%s4 + $0x30] sm:$0xff]
        %v683 = vld [vmem:[%s4 + $0x38] sm:$0xf]
        %v684 = vld [vmem:[%s4 + $0x3c] sm:$0xff]
        %v685 = vld [vmem:[%s4 + $0x44] sm:$0xf]
        %v686 = vld [vmem:[%s4 + $0x48] sm:$0xff]
        %v687 = vld [vmem:[%s4 + $0x50] sm:$0xf]
        %v688 = vld [vmem:[%s4 + $0x54] sm:$0xff]
        %v689 = vld [vmem:[%s4 + $0x5c] sm:$0xf]
        %v706 = vunpack.c.l.b16 %v674
        %v707 = vunpack.c.h.b16 %v674
        %v708 = vunpack.c.l.b16 %v675
        %v709 = vunpack.c.l.b16 %v676
        %v710 = vunpack.c.h.b16 %v676
        %v711 = vunpack.c.l.b16 %v677
        %v712 = vunpack.c.l.b16 %v678
        %v713 = vunpack.c.h.b16 %v678
        %v714 = vunpack.c.l.b16 %v679
        %v715 = vunpack.c.l.b16 %v680
        %v716 = vunpack.c.h.b16 %v680
        %v717 = vunpack.c.l.b16 %v681
        %v718 = vunpack.c.l.b16 %v682
        %v719 = vunpack.c.h.b16 %v682
        %v720 = vunpack.c.l.b16 %v683
        %v721 = vunpack.c.l.b16 %v684
        %v722 = vunpack.c.h.b16 %v684
        %v723 = vunpack.c.l.b16 %v685
        %v724 = vunpack.c.l.b16 %v686
        %v725 = vunpack.c.h.b16 %v686
        %v726 = vunpack.c.l.b16 %v687
        %v727 = vunpack.c.l.b16 %v688
        %v728 = vunpack.c.h.b16 %v688
        %v729 = vunpack.c.l.b16 %v689
        %v730 = vpack.c.b16 %v709, %v706
        %v731 = vpack.c.b16 %v710, %v707
        %v732 = vpack.c.b16 %v711, %v708
        %v733 = vpack.c.b16 %v715, %v712
        %v734 = vpack.c.b16 %v716, %v713
        %v735 = vpack.c.b16 %v717, %v714
        %v736 = vpack.c.b16 %v721, %v718
        %v737 = vpack.c.b16 %v722, %v719
        %v738 = vpack.c.b16 %v723, %v720
        %v739 = vpack.c.b16 %v727, %v724
        %v740 = vpack.c.b16 %v728, %v725
        %v741 = vpack.c.b16 %v729, %v726
        %v755 = vsel %vm289, %v673, 0
        %757 = vmatpush.bf16.msra.mxu0 0
        %758 = vmatpush.bf16.msra.mxu0 0
        %759 = vmatpush.bf16.msra.mxu0 0
        %760 = vmatpush.bf16.msra.mxu0 0
        %761 = vmatpush.bf16.msra.mxu0 %v739
        %762 = vmatpush.bf16.msra.mxu0 %v736
        %763 = vmatpush.bf16.msra.mxu0 %v733
        %764 = vmatpush.bf16.msra.mxu0 %v730
        %765 = vmatmul.bf16.gmra.mxu0 %v755
        %v766 = vpop.f32.mrf.mxu0
        %v767 = vadd.f32 0.0, %v766
        %v768 = vpop.f32.mrf.mxu0
        %769 = vdwg.mxu0
        %770 = vmatpush.bf16.msra.mxu0 0
        %771 = vmatpush.bf16.msra.mxu0 0
        %772 = vmatpush.bf16.msra.mxu0 0
        %773 = vmatpush.bf16.msra.mxu0 0
        %774 = vmatpush.bf16.msra.mxu0 %v740
        %775 = vmatpush.bf16.msra.mxu0 %v737
        %776 = vmatpush.bf16.msra.mxu0 %v734
        %777 = vmatpush.bf16.msra.mxu0 %v731
        %778 = vmatmul.bf16.gmra.mxu0 %v755
        %v779 = vpop.f32.mrf.mxu0
        %v780 = vadd.f32 0.0, %v779
        %v781 = vpop.f32.mrf.mxu0
        %782 = vdwg.mxu0
        %783 = vmatpush.bf16.msra.mxu0 0
        %784 = vmatpush.bf16.msra.mxu0 0
        %785 = vmatpush.bf16.msra.mxu0 0
        %786 = vmatpush.bf16.msra.mxu0 0
        %787 = vmatpush.bf16.msra.mxu0 %v741
        %788 = vmatpush.bf16.msra.mxu0 %v738
        %789 = vmatpush.bf16.msra.mxu0 %v735
        %790 = vmatpush.bf16.msra.mxu0 %v732
        %791 = vmatmul.bf16.gmra.mxu0 %v755
        %v792 = vpop.f32.mrf.mxu0
        %v793 = vadd.f32 0.0, %v792
        %v794 = vpop.f32.mrf.mxu0
        %795 = vdwg.mxu0
        %v796 = vsub.f32 0.0, %v767
        %v797 = vsub.f32 0.0, %v780
        %v798 = vmul.f32 %v796, 1.442695
        %v799 = vpow.pop %v798
        %v800 = vmul.f32 %v797, 1.442695
        %v801 = vpow.pop %v800
        %v802 = vadd.f32 %v799, 1.0
        %v803 = vadd.f32 %v801, 1.0
        %v804 = vrcp.pop %v802
        %v805 = vrcp.pop %v803
        %v806 = vmul.f32 %v767, %v804
        %v807 = vmul.f32 %v780, %v805
        %810 = vrot.lane.b32.xlu0 %v780, 64
        %v811 = vpop.permute.xlu0 %810
        %812 = vrot.lane.b32.xlu0 %v793, 64
        %v813 = vpop.permute.xlu0 %812
        %v814 = vsel %vm289, %v811, %v813
        %v817 = vmul.f32 %v806, %v814
        %v818 = vmul.f32 %v807, %v813
        %v819 = vpack.c.bf16 %v817, %v817
        %v820 = vpack.c.bf16 %v818, %v818
        %v821 = vld [vmem:[%s5] sm:$0xf]
        %v822 = vld [vmem:[%s5 + $0x4] sm:$0xf]
        %v823 = vld [vmem:[%s5 + $0x8] sm:$0xf]
        %v824 = vld [vmem:[%s5 + $0xc] sm:$0xf]
        %v825 = vld [vmem:[%s5 + $0x10] sm:$0xf]
        %v826 = vld [vmem:[%s5 + $0x14] sm:$0xf]
        %v827 = vld [vmem:[%s5 + $0x18] sm:$0xf]
        %v828 = vld [vmem:[%s5 + $0x1c] sm:$0xf]
        %v829 = vld [vmem:[%s5 + $0x20] sm:$0xf]
        %v830 = vld [vmem:[%s5 + $0x24] sm:$0xf]
        %v831 = vld [vmem:[%s5 + $0x28] sm:$0xf]
        %v832 = vld [vmem:[%s5 + $0x2c] sm:$0xf]
        %v833 = vld [vmem:[%s5 + $0x30] sm:$0xf]
        %v834 = vld [vmem:[%s5 + $0x34] sm:$0xf]
        %v835 = vld [vmem:[%s5 + $0x38] sm:$0xf]
        %v836 = vld [vmem:[%s5 + $0x3c] sm:$0xf]
        %v837 = vld [vmem:[%s5 + $0x40] sm:$0xf]
        %v838 = vld [vmem:[%s5 + $0x44] sm:$0xf]
        %v839 = vld [vmem:[%s5 + $0x48] sm:$0xf]
        %v840 = vld [vmem:[%s5 + $0x4c] sm:$0xf]
        %v841 = vld [vmem:[%s5 + $0x50] sm:$0xf]
        %v842 = vld [vmem:[%s5 + $0x54] sm:$0xf]
        %v843 = vld [vmem:[%s5 + $0x58] sm:$0xf]
        %v844 = vld [vmem:[%s5 + $0x5c] sm:$0xf]
        %v869 = vunpack.c.l.b16 %v821
        %v870 = vunpack.c.l.b16 %v822
        %v871 = vunpack.c.l.b16 %v823
        %v872 = vunpack.c.l.b16 %v824
        %v873 = vunpack.c.l.b16 %v825
        %v874 = vunpack.c.l.b16 %v826
        %v875 = vunpack.c.l.b16 %v827
        %v876 = vunpack.c.l.b16 %v828
        %v877 = vunpack.c.l.b16 %v829
        %v878 = vunpack.c.l.b16 %v830
        %v879 = vunpack.c.l.b16 %v831
        %v880 = vunpack.c.l.b16 %v832
        %v881 = vunpack.c.l.b16 %v833
        %v882 = vunpack.c.l.b16 %v834
        %v883 = vunpack.c.l.b16 %v835
        %v884 = vunpack.c.l.b16 %v836
        %v885 = vunpack.c.l.b16 %v837
        %v886 = vunpack.c.l.b16 %v838
        %v887 = vunpack.c.l.b16 %v839
        %v888 = vunpack.c.l.b16 %v840
        %v889 = vunpack.c.l.b16 %v841
        %v890 = vunpack.c.l.b16 %v842
        %v891 = vunpack.c.l.b16 %v843
        %v892 = vunpack.c.l.b16 %v844
        %v893 = vpack.c.b16 %v870, %v869
        %v894 = vpack.c.b16 %v872, %v871
        %v895 = vpack.c.b16 %v874, %v873
        %v896 = vpack.c.b16 %v876, %v875
        %v897 = vpack.c.b16 %v878, %v877
        %v898 = vpack.c.b16 %v880, %v879
        %v899 = vpack.c.b16 %v882, %v881
        %v900 = vpack.c.b16 %v884, %v883
        %v901 = vpack.c.b16 %v886, %v885
        %v902 = vpack.c.b16 %v888, %v887
        %v903 = vpack.c.b16 %v890, %v889
        %v904 = vpack.c.b16 %v892, %v891
        %v918 = vsel %vm289, %v820, 0
        %920 = vmatpush.bf16.msra.mxu0 %v900
        %921 = vmatpush.bf16.msra.mxu0 %v899
        %922 = vmatpush.bf16.msra.mxu0 %v898
        %923 = vmatpush.bf16.msra.mxu0 %v897
        %924 = vmatpush.bf16.msra.mxu0 %v896
        %925 = vmatpush.bf16.msra.mxu0 %v895
        %926 = vmatpush.bf16.msra.mxu0 %v894
        %927 = vmatpush.bf16.msra.mxu0 %v893
        %928 = vmatmul.bf16.gmra.mxu0 %v819
        %v929 = vpop.f32.mrf.mxu0
        %v930 = vadd.f32 0.0, %v929
        %v931 = vpop.f32.mrf.mxu0
        %932 = vdwg.mxu0
        %933 = vmatpush.bf16.msra.mxu0 0
        %934 = vmatpush.bf16.msra.mxu0 0
        %935 = vmatpush.bf16.msra.mxu0 0
        %936 = vmatpush.bf16.msra.mxu0 0
        %937 = vmatpush.bf16.msra.mxu0 %v904
        %938 = vmatpush.bf16.msra.mxu0 %v903
        %939 = vmatpush.bf16.msra.mxu0 %v902
        %940 = vmatpush.bf16.msra.mxu0 %v901
        %941 = vmatmul.bf16.gmra.mxu0 %v918
        %v942 = vpop.f32.mrf.mxu0
        %v943 = vadd.f32 %v930, %v942
        %v944 = vpop.f32.mrf.mxu0
        %945 = vdwg.mxu0
        %v946 = vadd.f32 %v655, %v943
        %947 = vst.msk [vmem:[%s285] sm:$0xff] %vm289, %v946
        %s948 = sand.u32 %s163, 1
        %s949 = scalar_lea.sflag [#allocation4], %s948
        %s950 = sand.u32 %s163, 1
        %s951 = smul.addr %s950, 8
        %s952 = scalar_lea.vmem [#allocation7], %s951
        // Predicated region
        $region53: #{transformer_block.1} parent=43 // pred_check
          %p953 = pneg %p173
        $region54: #{transformer_block.1} parent=43 // pred_check_branch
          %955 = sbr.rel (%p953) target = $region56
        $region55: #{transformer_block.1} parent=43 // pred_region
          %957 = vsyncadd %s949, 0
          %s958 = smul.addr %s24, 8
          %s959 = scalar_lea.hbm %s6, %s958
          %s961 = sshll.u32 %s952, 4
          %s962 = int_to_ptr.vmem [resolvable:$true] %s961
          %s963 = sshll.u32 %s959, 4
          %s964 = int_to_ptr.hbm [resolvable:$true] %s963
          %966 = dma.vmem_to_hbm [thread:$0]  %s962, 128, %s964, %s949
        $region56: #{transformer_block.1} parent=43 // pred_fallthru
          _
      $region44: #{transformer_block.1} parent=5 // pred_fallthru
        _
      %p967 = scmp.le.s32.totalorder 2, %s19
      // Predicated region
      $region57: #{transformer_block.1} parent=5 // pred_check
        %p968 = pneg %p967
      $region58: #{transformer_block.1} parent=5 // pred_check_branch
        %970 = sbr.rel (%p968) target = $region60
      $region59: #{transformer_block.1} parent=5 // pred_region
        %s971 = ssub.s32 %s19, 2
        // Predicated region
        $region61: #{transformer_block.1} parent=59 // pred_check
          %p972 = pneg %p179
        $region62: #{transformer_block.1} parent=59 // pred_check_branch
          %974 = sbr.rel (%p972) target = $region64
        $region63: #{transformer_block.1} parent=59 // pred_region
          %s975 = sand.u32 %s164, 1
          %s976 = scalar_lea.sflag [#allocation4], %s975
          %s977 = sand.u32 %s164, 1
          %s978 = smul.addr %s977, 8
          %s979 = scalar_lea.vmem [#allocation7], %s978
          %981 = dma.done %s976, 128
        $region64: #{transformer_block.1} parent=59 // pred_fallthru
          _
      $region60: #{transformer_block.1} parent=5 // pred_fallthru
        _
    $region6: #{transformer_block.1} parent=1 // loop_footer
      %s23 = sadd.s32 1, %s19
    $region7: #{transformer_block.1} parent=1 // loop_footer_branch
      %18 = sbr.rel target = $region3
    $region8: #{transformer_block.1} parent=1 // loop_exit
      _
    %982 = vsyncpa [#allocation3], 1
    %s983 = scalar_lea.sflag [#allocation3], 1
    %984 = vsyncpa %s983, 1
    %985 = vsyncpa [#allocation6], 1
    %986 = vsyncpa [#allocation4], 1
    %s987 = scalar_lea.sflag [#allocation4], 1
    %988 = vsyncpa %s987, 1

</llo_original>
